<compile_context>
chip_gen: v5e
topology: v5e:2x2
jax: 0.10.0
libtpu: 0.0.40
codegen_flags: <defaults>
</compile_context>

<pallas_src>
import math

import numpy as np

import jax
import jax.numpy as jnp
from jax.experimental import pallas as pl
from jax.experimental.pallas import tpu as pltpu

FREQ_EMB_SIZE = 256           # frequency_embedding_size (even)
HALF = FREQ_EMB_SIZE // 2     # 128 — exactly one lane-width per dot
HIDDEN = 32                   # hidden_size (small for the example)
SCALE = 1000.0
MAX_PERIOD = 10000.0

LANE = 128
SUBLANE = 8
MAX_TILE_N = 2048             # rows per grid step; ~1 MiB/tile of VMEM, ample headroom


def _round_up(x, m):
    return (x + m - 1) // m * m


def _num_tensorcores_per_chip():
    """Conservative per-chip TensorCore count (2 only for known megacore parts)."""
    try:
        kind = jax.devices()[0].device_kind.lower()
    except Exception:
        return 1
    return 2 if any(s in kind for s in ("v7", "v5p", "v4")) else 1


# freqs * SCALE, computed once on the host in float64 and rounded once to f32.
_FREQS_F32 = (
    np.exp(-math.log(MAX_PERIOD) * np.arange(HALF, dtype=np.float64) / HALF) * SCALE
).astype(np.float32).reshape(1, HALF)


def _timestep_embedder_kernel(t_ref, freqs_ref, w1c_ref, w1s_ref, b1_ref,
                              w2_ref, b2_ref, o_ref):
    # t_ref: (TILE_N, 1) f32;  freqs: (1, HALF);  w1c/w1s: (HALF, HP);
    # b1/b2: (1, HP);  w2: (HP, HP);  o_ref: (TILE_N, HP)
    args = t_ref[...] * freqs_ref[...]                                # (TILE_N, HALF)
    cos_a = jnp.cos(args)
    sin_a = jnp.sin(args)

    # concat([cos, sin], -1) @ W1  ==  cos @ W1[:half] + sin @ W1[half:]
    # (two K=128 dots that accumulate in the MXU result path, no XLU concat).
    h = (jnp.dot(cos_a, w1c_ref[...], preferred_element_type=jnp.float32)
         + jnp.dot(sin_a, w1s_ref[...], preferred_element_type=jnp.float32)
         + b1_ref[...])

    # SiLU:  x * sigmoid(x)  ==  x * 0.5 * (1 + tanh(x/2))  -> one EUP tanh.
    h = h * (0.5 * (1.0 + jnp.tanh(0.5 * h)))

    out = jnp.dot(h, w2_ref[...], preferred_element_type=jnp.float32) + b2_ref[...]
    o_ref[...] = out.astype(o_ref.dtype)


def prepare_timestep_embedder_params(w1, b1, w2, b2):
    """One-time parameter preparation (hoisted out of the per-call path).

    w1: (FREQ_EMB_SIZE, HIDDEN)   (torch W1.T)
    b1: (HIDDEN,)
    w2: (HIDDEN, HIDDEN)          (torch W2.T)
    b2: (HIDDEN,)
    """
    h = w1.shape[1]
    hp = _round_up(max(h, LANE), LANE)        # lane-dense padded hidden width
    pad_h = hp - h

    # Split W1 to avoid the lane-axis concat; zero-pad hidden dim to HP lanes.
    # Padded hidden columns stay exactly zero through bias add, SiLU and the
    # second dot, so slicing the output back to H is exact.
    params = {
        "hidden": h,
        "hp": hp,
        "freqs": jnp.asarray(_FREQS_F32),                                       # (1, HALF)
        "w1c": jnp.pad(w1[:HALF].astype(jnp.float32), ((0, 0), (0, pad_h))),    # (HALF, HP)
        "w1s": jnp.pad(w1[HALF:].astype(jnp.float32), ((0, 0), (0, pad_h))),    # (HALF, HP)
        "b1": jnp.pad(b1.astype(jnp.float32), (0, pad_h)).reshape(1, hp),
        "w2": jnp.pad(w2.astype(jnp.float32), ((0, pad_h), (0, pad_h))),        # (HP, HP)
        "b2": jnp.pad(b2.astype(jnp.float32), (0, pad_h)).reshape(1, hp),
    }
    return params


def timestep_embedder(t, params):
    """t: (N,) float -> (N, HIDDEN) float32, using prepared `params`."""
    n = t.shape[0]
    h = params["hidden"]
    hp = params["hp"]

    # Tile the N (sublane) axis: multiple of 8, capped at MAX_TILE_N, and at
    # least `num_cores` tiles so the ("parallel",) grid feeds every TensorCore.
    num_cores = _num_tensorcores_per_chip()
    n_pad = _round_up(max(n, SUBLANE), SUBLANE)
    min_tiles = num_cores if n_pad >= num_cores * SUBLANE else 1
    tile_n = min(MAX_TILE_N, _round_up(pl.cdiv(n_pad, min_tiles), SUBLANE))
    n_pad = _round_up(n_pad, tile_n)
    grid = (n_pad // tile_n,)

    t2d = jnp.pad(t.astype(jnp.float32), (0, n_pad - n)).reshape(n_pad, 1)

    out = pl.pallas_call(
        _timestep_embedder_kernel,
        out_shape=jax.ShapeDtypeStruct((n_pad, hp), jnp.float32),
        grid_spec=pltpu.PrefetchScalarGridSpec(
            num_scalar_prefetch=0,
            grid=grid,
            in_specs=[
                pl.BlockSpec((tile_n, 1), lambda i: (i, 0)),     # t      (tiled over N)
                pl.BlockSpec((1, HALF), lambda i: (0, 0)),       # freqs  (resident)
                pl.BlockSpec((HALF, hp), lambda i: (0, 0)),      # w1_cos (resident)
                pl.BlockSpec((HALF, hp), lambda i: (0, 0)),      # w1_sin (resident)
                pl.BlockSpec((1, hp), lambda i: (0, 0)),         # b1     (resident)
                pl.BlockSpec((hp, hp), lambda i: (0, 0)),        # w2     (resident)
                pl.BlockSpec((1, hp), lambda i: (0, 0)),         # b2     (resident)
            ],
            out_specs=pl.BlockSpec((tile_n, hp), lambda i: (i, 0)),
        ),
        compiler_params=pltpu.CompilerParams(
            dimension_semantics=("parallel",),   # shards N tiles across TCs on megacore parts
        ),
    )(t2d, params["freqs"], params["w1c"], params["w1s"], params["b1"],
      params["w2"], params["b2"])

    # For a standalone module the consumer needs (N, H); when this embedder is
    # fused into the adjacent DiT/adaLN kernel the padded buffer can be consumed
    # directly and this slice disappears.
    return out[:n, :h]


def _reference(t, w1, b1, w2, b2):
    half = FREQ_EMB_SIZE // 2
    freqs = jnp.exp(-math.log(MAX_PERIOD) * jnp.arange(half, dtype=jnp.float32) / half)
    args = SCALE * t[:, None].astype(jnp.float32) * freqs[None]
    emb = jnp.concatenate([jnp.cos(args), jnp.sin(args)], axis=-1)
    h = emb @ w1 + b1
    h = h * jax.nn.sigmoid(h)
    return h @ w2 + b2


if __name__ == "__main__":
    key = jax.random.PRNGKey(0)
    k_t, k_w1, k_b1, k_w2, k_b2 = jax.random.split(key, 5)

    N = 2
    t = jax.random.uniform(k_t, (N,), dtype=jnp.float32)  # fractional timesteps

    # Synthetic params (shapes from nn.Linear, stored as (in, out) = torch W.T):
    w1 = (jax.random.normal(k_w1, (FREQ_EMB_SIZE, HIDDEN), jnp.float32)
          / jnp.sqrt(FREQ_EMB_SIZE))
    b1 = jax.random.normal(k_b1, (HIDDEN,), jnp.float32) * 0.01
    w2 = jax.random.normal(k_w2, (HIDDEN, HIDDEN), jnp.float32) / jnp.sqrt(HIDDEN)
    b2 = jax.random.normal(k_b2, (HIDDEN,), jnp.float32) * 0.01

    # One-time parameter preparation (hoisted out of the per-call path).
    params = prepare_timestep_embedder_params(w1, b1, w2, b2)
    jax.block_until_ready(params)

    out = timestep_embedder(t, params)
    out = jax.block_until_ready(out)

    ref = _reference(t, w1, b1, w2, b2)
    assert out.shape == (N, HIDDEN)
    # Tolerance accounts for f32 sin/cos range reduction at args ~1e3 plus MXU
    # f32 multi-pass rounding, and the f64-vs-f32 freqs table difference.
    assert jnp.allclose(out, ref, atol=2e-3, rtol=2e-3), "mismatch vs reference"

    print("KERNEL_OK")
</pallas_src>

<mosaic_0001>
module attributes {stable_mosaic.version = 11 : i64} {
  func.func @_timestep_embedder_kernel(%arg0: i32, %arg1: memref<8x1xf32, #tpu.memory_space<vmem>>, %arg2: memref<1x128xf32, #tpu.memory_space<vmem>>, %arg3: memref<128x128xf32, #tpu.memory_space<vmem>>, %arg4: memref<128x128xf32, #tpu.memory_space<vmem>>, %arg5: memref<1x128xf32, #tpu.memory_space<vmem>>, %arg6: memref<128x128xf32, #tpu.memory_space<vmem>>, %arg7: memref<1x128xf32, #tpu.memory_space<vmem>>, %arg8: memref<8x128xf32, #tpu.memory_space<vmem>>) attributes {dimension_semantics = [#tpu.dimension_semantics<parallel>], iteration_bounds = array<i64: 1>, scalar_prefetch = 0 : i64, scratch_operands = 0 : i64, tpu.core_type = #tpu.core_type<tc>, window_params = [{transform_indices = @transform_0, window_bounds = array<i64: 8, 1>}, {pipeline_mode = #tpu.pipeline_mode<synchronous>, transform_indices = @transform_1, window_bounds = array<i64: 1, 128>}, {pipeline_mode = #tpu.pipeline_mode<synchronous>, transform_indices = @transform_2, window_bounds = array<i64: 128, 128>}, {pipeline_mode = #tpu.pipeline_mode<synchronous>, transform_indices = @transform_3, window_bounds = array<i64: 128, 128>}, {pipeline_mode = #tpu.pipeline_mode<synchronous>, transform_indices = @transform_4, window_bounds = array<i64: 1, 128>}, {pipeline_mode = #tpu.pipeline_mode<synchronous>, transform_indices = @transform_5, window_bounds = array<i64: 128, 128>}, {pipeline_mode = #tpu.pipeline_mode<synchronous>, transform_indices = @transform_6, window_bounds = array<i64: 1, 128>}, {transform_indices = @transform_7, window_bounds = array<i64: 8, 128>}]} {
    %c0 = arith.constant 0 : index
    %c0_0 = arith.constant 0 : index
    %0 = vector.load %arg1[%c0, %c0_0] : memref<8x1xf32, #tpu.memory_space<vmem>>, vector<8x1xf32>
    %c0_1 = arith.constant 0 : index
    %c0_2 = arith.constant 0 : index
    %1 = vector.load %arg2[%c0_1, %c0_2] : memref<1x128xf32, #tpu.memory_space<vmem>>, vector<1x128xf32>
    %2 = vector.broadcast %0 : vector<8x1xf32> to vector<8x128xf32>
    %3 = vector.broadcast %1 : vector<1x128xf32> to vector<8x128xf32>
    %4 = arith.mulf %2, %3 : vector<8x128xf32>
    %5 = math.cos %4 : vector<8x128xf32>
    %6 = math.sin %4 : vector<8x128xf32>
    %c0_3 = arith.constant 0 : index
    %c0_4 = arith.constant 0 : index
    %7 = vector.load %arg3[%c0_3, %c0_4] : memref<128x128xf32, #tpu.memory_space<vmem>>, vector<128x128xf32>
    %cst = arith.constant dense<0.000000e+00> : vector<8x128xf32>
    %8 = tpu.matmul %5, %7, %cst {dimension_numbers = #tpu.dot_dimension_numbers<[1], [0], [0], [1], [0, 0, 1, 1], [], []>} : vector<8x128xf32>, vector<128x128xf32>, vector<8x128xf32> -> vector<8x128xf32>
    %c0_5 = arith.constant 0 : index
    %c0_6 = arith.constant 0 : index
    %9 = vector.load %arg4[%c0_5, %c0_6] : memref<128x128xf32, #tpu.memory_space<vmem>>, vector<128x128xf32>
    %cst_7 = arith.constant dense<0.000000e+00> : vector<8x128xf32>
    %10 = tpu.matmul %6, %9, %cst_7 {dimension_numbers = #tpu.dot_dimension_numbers<[1], [0], [0], [1], [0, 0, 1, 1], [], []>} : vector<8x128xf32>, vector<128x128xf32>, vector<8x128xf32> -> vector<8x128xf32>
    %11 = arith.addf %8, %10 : vector<8x128xf32>
    %c0_8 = arith.constant 0 : index
    %c0_9 = arith.constant 0 : index
    %12 = vector.load %arg5[%c0_8, %c0_9] : memref<1x128xf32, #tpu.memory_space<vmem>>, vector<1x128xf32>
    %13 = vector.broadcast %12 : vector<1x128xf32> to vector<8x128xf32>
    %14 = arith.addf %11, %13 : vector<8x128xf32>
    %cst_10 = arith.constant 5.000000e-01 : f32
    %15 = vector.broadcast %cst_10 : f32 to vector<8x128xf32>
    %16 = arith.mulf %15, %14 : vector<8x128xf32>
    %17 = math.tanh %16 : vector<8x128xf32>
    %cst_11 = arith.constant 1.000000e+00 : f32
    %18 = vector.broadcast %cst_11 : f32 to vector<8x128xf32>
    %19 = arith.addf %18, %17 : vector<8x128xf32>
    %cst_12 = arith.constant 5.000000e-01 : f32
    %20 = vector.broadcast %cst_12 : f32 to vector<8x128xf32>
    %21 = arith.mulf %20, %19 : vector<8x128xf32>
    %22 = arith.mulf %14, %21 : vector<8x128xf32>
    %c0_13 = arith.constant 0 : index
    %c0_14 = arith.constant 0 : index
    %23 = vector.load %arg6[%c0_13, %c0_14] : memref<128x128xf32, #tpu.memory_space<vmem>>, vector<128x128xf32>
    %cst_15 = arith.constant dense<0.000000e+00> : vector<8x128xf32>
    %24 = tpu.matmul %22, %23, %cst_15 {dimension_numbers = #tpu.dot_dimension_numbers<[1], [0], [0], [1], [0, 0, 1, 1], [], []>} : vector<8x128xf32>, vector<128x128xf32>, vector<8x128xf32> -> vector<8x128xf32>
    %c0_16 = arith.constant 0 : index
    %c0_17 = arith.constant 0 : index
    %25 = vector.load %arg7[%c0_16, %c0_17] : memref<1x128xf32, #tpu.memory_space<vmem>>, vector<1x128xf32>
    %26 = vector.broadcast %25 : vector<1x128xf32> to vector<8x128xf32>
    %27 = arith.addf %24, %26 : vector<8x128xf32>
    %c0_18 = arith.constant 0 : index
    %c0_19 = arith.constant 0 : index
    %28 = vector.load %arg8[%c0_18, %c0_19] : memref<8x128xf32, #tpu.memory_space<vmem>>, vector<8x128xf32>
    tpu.vector_store %arg8[%c0_18, %c0_19], %27 {strides = array<i32>} : memref<8x128xf32, #tpu.memory_space<vmem>>, vector<8x128xf32>,
    return
  }
  func.func @transform_0(%arg0: i32) -> (i32, i32) {
    %c0_i32 = arith.constant 0 : i32
    %c0_i32_0 = arith.constant 0 : i32
    return %arg0, %c0_i32 : i32, i32
  }
  func.func @transform_1(%arg0: i32) -> (i32, i32) {
    %c0_i32 = arith.constant 0 : i32
    %c0_i32_0 = arith.constant 0 : i32
    %c0_i32_1 = arith.constant 0 : i32
    return %c0_i32, %c0_i32_0 : i32, i32
  }
  func.func @transform_2(%arg0: i32) -> (i32, i32) {
    %c0_i32 = arith.constant 0 : i32
    %c0_i32_0 = arith.constant 0 : i32
    %c0_i32_1 = arith.constant 0 : i32
    return %c0_i32, %c0_i32_0 : i32, i32
  }
  func.func @transform_3(%arg0: i32) -> (i32, i32) {
    %c0_i32 = arith.constant 0 : i32
    %c0_i32_0 = arith.constant 0 : i32
    %c0_i32_1 = arith.constant 0 : i32
    return %c0_i32, %c0_i32_0 : i32, i32
  }
  func.func @transform_4(%arg0: i32) -> (i32, i32) {
    %c0_i32 = arith.constant 0 : i32
    %c0_i32_0 = arith.constant 0 : i32
    %c0_i32_1 = arith.constant 0 : i32
    return %c0_i32, %c0_i32_0 : i32, i32
  }
  func.func @transform_5(%arg0: i32) -> (i32, i32) {
    %c0_i32 = arith.constant 0 : i32
    %c0_i32_0 = arith.constant 0 : i32
    %c0_i32_1 = arith.constant 0 : i32
    return %c0_i32, %c0_i32_0 : i32, i32
  }
  func.func @transform_6(%arg0: i32) -> (i32, i32) {
    %c0_i32 = arith.constant 0 : i32
    %c0_i32_0 = arith.constant 0 : i32
    %c0_i32_1 = arith.constant 0 : i32
    return %c0_i32, %c0_i32_0 : i32, i32
  }
  func.func @transform_7(%arg0: i32) -> (i32, i32) {
    %c0_i32 = arith.constant 0 : i32
    %c0_i32_0 = arith.constant 0 : i32
    return %arg0, %c0_i32 : i32, i32
  }
}

</mosaic_0001>

<llo_original>
// kernel: tpu_custom_call.1
$region0: #{tpu_custom_call.1}
  #allocation0 [shape = 'u32[]', space=smem, size = 0x4, offset = 0x4, fixed_abs, tag = 'smem constant byte address 0x4 - core index']
  #allocation1 [shape = 'u32[72,128]{1,0:T(1,128)}', space=vmem, size = 0x9000, scoped, tag = 'internal scratch']
  %s0 = inlined_call_operand.vmem [shape: f32[8,1], index: 0, kind: input, shape index: {}]
  %s1 = inlined_call_operand.vmem [shape: f32[1,128], index: 1, kind: input, shape index: {}]
  %s2 = inlined_call_operand.hbm [shape: f32[128,128], index: 2, kind: input, shape index: {}]
  %s3 = inlined_call_operand.hbm [shape: f32[128,128], index: 3, kind: input, shape index: {}]
  %s4 = inlined_call_operand.vmem [shape: f32[1,128], index: 4, kind: input, shape index: {}]
  %s5 = inlined_call_operand.hbm [shape: f32[128,128], index: 5, kind: input, shape index: {}]
  %s6 = inlined_call_operand.vmem [shape: f32[1,128], index: 6, kind: input, shape index: {}]
  %s7 = inlined_call_operand.hbm [shape: f32[8,128], index: 7, kind: output, shape index: {}]
  %s8 = sld [smem:[#allocation0]]
  $region50: #{tpu_custom_call.1} parent=0
    _
  %s10 = ssub.s32 1, %s8
  %s11 = scalar_select 0, %s10, %s8
  $region1: #{tpu_custom_call.1} parent=0
    #allocation2 [shape = 'u8[65536]{0}', space=vmem, size = 0x10000, scoped, tag = 'input window, operand 2, single buffered']
    #allocation3 [shape = 's32[1]{0}', space=sflag, size = 0x4, scoped, tag = 'scoped memory for tpu_custom_call.1']
    #allocation4 [shape = 's32[1]{0}', space=sflag, size = 0x4, scoped, tag = 'scoped memory for tpu_custom_call.1']
    #allocation5 [shape = 'u8[65536]{0}', space=vmem, size = 0x10000, scoped, tag = 'input window, operand 3, single buffered']
    #allocation6 [shape = 's32[1]{0}', space=sflag, size = 0x4, scoped, tag = 'scoped memory for tpu_custom_call.1']
    #allocation7 [shape = 'u8[65536]{0}', space=vmem, size = 0x10000, scoped, tag = 'input window, operand 5, single buffered']
    #allocation8 [shape = 'u8[4096]{0}', space=vmem, size = 0x1000, scoped, tag = 'output window, operand 0, single buffered']
    %12 = vsyncpa [#allocation3], 0
    %13 = vsyncpa [#allocation6], 0
    %14 = vsyncpa [#allocation4], 0
    // Predicated region
    $region2: #{tpu_custom_call.1} parent=1 // pred_check
      _
    $region3: #{tpu_custom_call.1} parent=1 // pred_check_branch
      %16 = sbr.rel (0) target = $region5
    $region4: #{tpu_custom_call.1} parent=1 // pred_region
      _
    $region5: #{tpu_custom_call.1} parent=1 // pred_fallthru
      _
    // Predicated region
    $region6: #{tpu_custom_call.1} parent=1 // pred_check
      _
    $region7: #{tpu_custom_call.1} parent=1 // pred_check_branch
      %18 = sbr.rel (0) target = $region9
    $region8: #{tpu_custom_call.1} parent=1 // pred_region
      _
    $region9: #{tpu_custom_call.1} parent=1 // pred_fallthru
      _
    // Predicated region
    $region10: #{tpu_custom_call.1} parent=1 // pred_check
      _
    $region11: #{tpu_custom_call.1} parent=1 // pred_check_branch
      %20 = sbr.rel (0) target = $region13
    $region12: #{tpu_custom_call.1} parent=1 // pred_region
      %22 = vsyncadd [#allocation3], 0
      %s23 = sshll.u32 %s2, 4
      %s24 = int_to_ptr.hbm [resolvable:$true] %s23
      %s25 = sshll.u32 [#allocation2], 4
      %s26 = int_to_ptr.vmem [resolvable:$true] %s25
      %31 = dma.hbm_to_vmem [thread:$0]  %s24, 2048, %s26, [#allocation3], 128, 128, 8
    $region13: #{tpu_custom_call.1} parent=1 // pred_fallthru
      _
    // Predicated region
    $region14: #{tpu_custom_call.1} parent=1 // pred_check
      _
    $region15: #{tpu_custom_call.1} parent=1 // pred_check_branch
      %33 = sbr.rel (0) target = $region17
    $region16: #{tpu_custom_call.1} parent=1 // pred_region
      %35 = vsyncadd [#allocation6], 0
      %s36 = sshll.u32 %s3, 4
      %s37 = int_to_ptr.hbm [resolvable:$true] %s36
      %s38 = sshll.u32 [#allocation5], 4
      %s39 = int_to_ptr.vmem [resolvable:$true] %s38
      %44 = dma.hbm_to_vmem [thread:$0]  %s37, 2048, %s39, [#allocation6], 128, 128, 8
    $region17: #{tpu_custom_call.1} parent=1 // pred_fallthru
      _
    // Predicated region
    $region18: #{tpu_custom_call.1} parent=1 // pred_check
      _
    $region19: #{tpu_custom_call.1} parent=1 // pred_check_branch
      %46 = sbr.rel (0) target = $region21
    $region20: #{tpu_custom_call.1} parent=1 // pred_region
      _
    $region21: #{tpu_custom_call.1} parent=1 // pred_fallthru
      _
    // Predicated region
    $region22: #{tpu_custom_call.1} parent=1 // pred_check
      _
    $region23: #{tpu_custom_call.1} parent=1 // pred_check_branch
      %48 = sbr.rel (0) target = $region25
    $region24: #{tpu_custom_call.1} parent=1 // pred_region
      %50 = vsyncadd [#allocation6], 0
      %s51 = sshll.u32 %s5, 4
      %s52 = int_to_ptr.hbm [resolvable:$true] %s51
      %s53 = sshll.u32 [#allocation7], 4
      %s54 = int_to_ptr.vmem [resolvable:$true] %s53
      %59 = dma.hbm_to_vmem [thread:$0]  %s52, 2048, %s54, [#allocation6], 128, 128, 8
    $region25: #{tpu_custom_call.1} parent=1 // pred_fallthru
      _
    // Predicated region
    $region26: #{tpu_custom_call.1} parent=1 // pred_check
      _
    $region27: #{tpu_custom_call.1} parent=1 // pred_check_branch
      %61 = sbr.rel (0) target = $region29
    $region28: #{tpu_custom_call.1} parent=1 // pred_region
      _
    $region29: #{tpu_custom_call.1} parent=1 // pred_fallthru
      _
    // Predicated region
    $region30: #{tpu_custom_call.1} parent=1 // pred_check
      _
    $region31: #{tpu_custom_call.1} parent=1 // pred_check_branch
      %63 = sbr.rel (0) target = $region33
    $region32: #{tpu_custom_call.1} parent=1 // pred_region
      %65 = dma.done [#allocation3], 2048
    $region33: #{tpu_custom_call.1} parent=1 // pred_fallthru
      _
    // Predicated region
    $region34: #{tpu_custom_call.1} parent=1 // pred_check
      _
    $region35: #{tpu_custom_call.1} parent=1 // pred_check_branch
      %67 = sbr.rel (0) target = $region37
    $region36: #{tpu_custom_call.1} parent=1 // pred_region
      %69 = dma.done [#allocation6], 2048
    $region37: #{tpu_custom_call.1} parent=1 // pred_fallthru
      _
    // Predicated region
    $region38: #{tpu_custom_call.1} parent=1 // pred_check
      _
    $region39: #{tpu_custom_call.1} parent=1 // pred_check_branch
      %71 = sbr.rel (0) target = $region41
    $region40: #{tpu_custom_call.1} parent=1 // pred_region
      %73 = dma.done [#allocation6], 2048
    $region41: #{tpu_custom_call.1} parent=1 // pred_fallthru
      _
    %v74 = vld [vmem:[%s0] sm:$0xff]
    %v75 = vld [vmem:[%s1] sm:$0x1]
    %77 = vset.pattern.permute.xlu0 0
    %78 = vperm.xlu0 %77, %v74
    %v79 = vpop.permute.xlu0 %78
    %v82 = vperm.slane %v75, 0
    %v84 = vmul.f32 %v79, %v82
    %v85 = vand.u32 2147483647, %v84
    %vm86 = vcmp.le.f32.partialorder %v85, 0.7853982
    %vm87 = vcmp.lt.s32.totalorder %v84, 0
    %v88 = vand.u32 %v84, 2139095040
    %v89 = vshrl.u32 %v88, 23
    %v90 = vsub.s32 %v89, 127
    %v91 = vand.u32 2147483647, %v84
    %v92 = vand.u32 %v91, 8388607
    %v93 = vor.u32 %v92, 8388608
    %v94 = vsub.s32 0, %v93
    %v95 = vadd.s32 %v90, 1
    %vm96 = vcmp.gt.s32.totalorder %v95, 0
    %v97 = vsel %vm96, %v95, 0
    %v98 = vshrl.u32 %v97, 5
    %v99 = vand.u32 %v97, 31
    %v100 = vsub.s32 32, %v99
    %v101 = vshrl.u32 683565275, %v100
    %v102 = vshll.u32 683565275, %v99
    %v103 = vshrl.u32 2475754826, %v100
    %v104 = vor.u32 %v102, %v103
    %v105 = vshll.u32 2475754826, %v99
    %v106 = vshrl.u32 2131351028, %v100
    %v107 = vor.u32 %v105, %v106
    %v108 = vshll.u32 2131351028, %v99
    %v109 = vshrl.u32 2102212464, %v100
    %v110 = vor.u32 %v108, %v109
    %v111 = vshll.u32 2102212464, %v99
    %v112 = vshrl.u32 920167782, %v100
    %v113 = vor.u32 %v111, %v112
    %v114 = vshll.u32 920167782, %v99
    %v115 = vshrl.u32 1326507024, %v100
    %v116 = vor.u32 %v114, %v115
    %vm117 = vcmp.lt.s32.totalorder %v98, 1
    %vm118 = vcmp.lt.s32.totalorder %v98, 2
    %vm119 = vcmp.lt.s32.totalorder %v98, 3
    %vm120 = vcmp.lt.s32.totalorder %v98, 4
    %v121 = vsel %vm117, %v101, %v104
    %v122 = vsel %vm120, %v110, 2102212464
    %v123 = vsel %vm119, %v107, %v122
    %v124 = vsel %vm118, %v121, %v123
    %v125 = vsel %vm117, %v104, %v107
    %v126 = vsel %vm120, %v113, 920167782
    %v127 = vsel %vm119, %v110, %v126
    %v128 = vsel %vm118, %v125, %v127
    %v129 = vsel %vm117, %v107, %v110
    %v130 = vsel %vm120, %v116, 1326507024
    %v131 = vsel %vm119, %v113, %v130
    %v132 = vsel %vm118, %v129, %v131
    %v133 = vshll.u32 %v93, 8
    %v134 = vand.u32 %v133, 65535
    %v135 = vshrl.u32 %v133, 16
    %v136 = vand.u32 %v132, 65535
    %v137 = vshrl.u32 %v132, 16
    %v138 = vmul.u32 %v134, %v136
    %v139 = vmul.u32 %v134, %v137
    %v140 = vmul.u32 %v135, %v136
    %v141 = vmul.u32 %v135, %v137
    %v142 = vshll.u32 %v139, 16
    %v143 = vshrl.u32 %v139, 16
    %v144 = vshll.u32 %v140, 16
    %v145 = vshrl.u32 %v140, 16
    %vm146 = vc.u32 %v138, %v142
    %v147 = vsel %vm146, 1, 0
    %v148 = vadd.s32 %v138, %v142
    %v149 = vadd.s32 %v141, %v147
    %vm150 = vc.u32 %v148, %v144
    %v151 = vsel %vm150, 1, 0
    %v152 = vadd.s32 %v148, %v144
    %v153 = vadd.s32 %v149, %v151
    %v154 = vadd.s32 %v153, %v143
    %v155 = vadd.s32 %v154, %v145
    %v156 = vand.u32 %v133, 65535
    %v157 = vshrl.u32 %v133, 16
    %v158 = vand.u32 %v128, 65535
    %v159 = vshrl.u32 %v128, 16
    %v160 = vmul.u32 %v156, %v158
    %v161 = vmul.u32 %v156, %v159
    %v162 = vmul.u32 %v157, %v158
    %v163 = vmul.u32 %v157, %v159
    %v164 = vshll.u32 %v161, 16
    %v165 = vshrl.u32 %v161, 16
    %v166 = vshll.u32 %v162, 16
    %v167 = vshrl.u32 %v162, 16
    %vm168 = vc.u32 %v160, %v164
    %v169 = vsel %vm168, 1, 0
    %v170 = vadd.s32 %v160, %v164
    %v171 = vadd.s32 %v163, %v169
    %vm172 = vc.u32 %v170, %v166
    %v173 = vsel %vm172, 1, 0
    %v174 = vadd.s32 %v170, %v166
    %v175 = vadd.s32 %v171, %v173
    %v176 = vadd.s32 %v175, %v165
    %v177 = vadd.s32 %v176, %v167
    %v178 = vmul.u32 %v133, %v124
    %v179 = vadd.s32 %v155, %v174
    %vm180 = vc.u32 %v155, %v174
    %v181 = vadd.s32 %v177, 1
    %v182 = vsel %vm180, %v181, %v177
    %v183 = vadd.s32 %v178, %v182
    %v184 = vadd.s32 %v183, 536870912
    %v185 = vshrl.u32 %v184, 30
    %v186 = vshll.u32 %v185, 30
    %v187 = vsub.s32 %v183, %v186
    %vm188 = vcmp.lt.s32.totalorder %v187, 0
    %v189 = vsub.s32 0, %v187
    %v190 = vsel %vm188, %v189, %v187
    %v191 = vclz %v190
    %v192 = vsub.s32 %v191, 2
    %vm193 = vcmp.gt.s32.totalorder 0, %v192
    %v194 = vsel %vm193, 0, %v192
    %v195 = vsub.s32 32, %v194
    %v196 = vshll.u32 %v187, %v194
    %v197 = vshrl.u32 %v179, %v195
    %v198 = vor.u32 %v196, %v197
    %v199 = vsub.s32 4294967266, %v194
    %v200 = vadd.s32 %v199, 127
    %v201 = vshll.u32 %v200, 23
    %v202 = vor.u32 4788187, %v201
    %v203 = vand.u32 2147483647, %v202
    %v205 = vcvt.s32.f32 %v198
    %v206 = vmul.f32 %v205, %v203
    %v207 = vxor.u32 %v206, 2147483648
    %v208 = vsel %vm87, %v207, %v206
    %v209 = vsub.s32 4, %v185
    %v210 = vsel %vm87, %v209, %v185
    %v211 = vsel %vm86, %v84, %v208
    %v212 = vsel %vm86, 0, %v210
    %v213 = vmul.f32 %v211, %v211
    %v214 = vmul.f32 %v213, -0.001358992
    %v215 = vadd.f32 %v214, 0.041655596
    %v216 = vmul.f32 %v213, %v215
    %v217 = vadd.f32 %v216, -0.4999988
    %v218 = vmul.f32 %v213, %v217
    %v219 = vadd.f32 1.0, %v218
    %v220 = vmul.f32 %v211, %v211
    %v221 = vmul.f32 %v220, -0.00019511016
    %v222 = vadd.f32 %v221, 0.008332121
    %v223 = vmul.f32 %v220, %v222
    %v224 = vadd.f32 %v223, -0.16666654
    %v225 = vmul.f32 %v220, %v224
    %v226 = vadd.f32 %v225, 1.0
    %v227 = vmul.f32 %v226, %v211
    %vm228 = vweird.f32 %v84
    %v229 = vand.u32 %v212, 3
    %vm230 = vcmp.lt.s32.totalorder %v229, 2
    %vm231 = vcmp.eq.s32.totalorder %v229, 0
    %v232 = vxor.u32 %v227, 2147483648
    %v233 = vsel %vm231, %v219, %v232
    %vm234 = vcmp.eq.s32.totalorder %v229, 2
    %v235 = vxor.u32 %v219, 2147483648
    %v236 = vsel %vm234, %v235, %v227
    %v237 = vsel %vm230, %v233, %v236
    %v238 = vsel %vm228, nan, %v237
    %v239 = vand.u32 2147483647, %v84
    %vm240 = vcmp.le.f32.partialorder %v239, 0.7853982
    %vm241 = vcmp.lt.s32.totalorder %v84, 0
    %v242 = vand.u32 %v84, 2139095040
    %v243 = vshrl.u32 %v242, 23
    %v244 = vsub.s32 %v243, 127
    %v245 = vand.u32 2147483647, %v84
    %v246 = vand.u32 %v245, 8388607
    %v247 = vor.u32 %v246, 8388608
    %v248 = vsub.s32 0, %v247
    %v249 = vadd.s32 %v244, 1
    %vm250 = vcmp.gt.s32.totalorder %v249, 0
    %v251 = vsel %vm250, %v249, 0
    %v252 = vshrl.u32 %v251, 5
    %v253 = vand.u32 %v251, 31
    %v254 = vsub.s32 32, %v253
    %v255 = vshrl.u32 683565275, %v254
    %v256 = vshll.u32 683565275, %v253
    %v257 = vshrl.u32 2475754826, %v254
    %v258 = vor.u32 %v256, %v257
    %v259 = vshll.u32 2475754826, %v253
    %v260 = vshrl.u32 2131351028, %v254
    %v261 = vor.u32 %v259, %v260
    %v262 = vshll.u32 2131351028, %v253
    %v263 = vshrl.u32 2102212464, %v254
    %v264 = vor.u32 %v262, %v263
    %v265 = vshll.u32 2102212464, %v253
    %v266 = vshrl.u32 920167782, %v254
    %v267 = vor.u32 %v265, %v266
    %v268 = vshll.u32 920167782, %v253
    %v269 = vshrl.u32 1326507024, %v254
    %v270 = vor.u32 %v268, %v269
    %vm271 = vcmp.lt.s32.totalorder %v252, 1
    %vm272 = vcmp.lt.s32.totalorder %v252, 2
    %vm273 = vcmp.lt.s32.totalorder %v252, 3
    %vm274 = vcmp.lt.s32.totalorder %v252, 4
    %v275 = vsel %vm271, %v255, %v258
    %v276 = vsel %vm274, %v264, 2102212464
    %v277 = vsel %vm273, %v261, %v276
    %v278 = vsel %vm272, %v275, %v277
    %v279 = vsel %vm271, %v258, %v261
    %v280 = vsel %vm274, %v267, 920167782
    %v281 = vsel %vm273, %v264, %v280
    %v282 = vsel %vm272, %v279, %v281
    %v283 = vsel %vm271, %v261, %v264
    %v284 = vsel %vm274, %v270, 1326507024
    %v285 = vsel %vm273, %v267, %v284
    %v286 = vsel %vm272, %v283, %v285
    %v287 = vshll.u32 %v247, 8
    %v288 = vand.u32 %v287, 65535
    %v289 = vshrl.u32 %v287, 16
    %v290 = vand.u32 %v286, 65535
    %v291 = vshrl.u32 %v286, 16
    %v292 = vmul.u32 %v288, %v290
    %v293 = vmul.u32 %v288, %v291
    %v294 = vmul.u32 %v289, %v290
    %v295 = vmul.u32 %v289, %v291
    %v296 = vshll.u32 %v293, 16
    %v297 = vshrl.u32 %v293, 16
    %v298 = vshll.u32 %v294, 16
    %v299 = vshrl.u32 %v294, 16
    %vm300 = vc.u32 %v292, %v296
    %v301 = vsel %vm300, 1, 0
    %v302 = vadd.s32 %v292, %v296
    %v303 = vadd.s32 %v295, %v301
    %vm304 = vc.u32 %v302, %v298
    %v305 = vsel %vm304, 1, 0
    %v306 = vadd.s32 %v302, %v298
    %v307 = vadd.s32 %v303, %v305
    %v308 = vadd.s32 %v307, %v297
    %v309 = vadd.s32 %v308, %v299
    %v310 = vand.u32 %v287, 65535
    %v311 = vshrl.u32 %v287, 16
    %v312 = vand.u32 %v282, 65535
    %v313 = vshrl.u32 %v282, 16
    %v314 = vmul.u32 %v310, %v312
    %v315 = vmul.u32 %v310, %v313
    %v316 = vmul.u32 %v311, %v312
    %v317 = vmul.u32 %v311, %v313
    %v318 = vshll.u32 %v315, 16
    %v319 = vshrl.u32 %v315, 16
    %v320 = vshll.u32 %v316, 16
    %v321 = vshrl.u32 %v316, 16
    %vm322 = vc.u32 %v314, %v318
    %v323 = vsel %vm322, 1, 0
    %v324 = vadd.s32 %v314, %v318
    %v325 = vadd.s32 %v317, %v323
    %vm326 = vc.u32 %v324, %v320
    %v327 = vsel %vm326, 1, 0
    %v328 = vadd.s32 %v324, %v320
    %v329 = vadd.s32 %v325, %v327
    %v330 = vadd.s32 %v329, %v319
    %v331 = vadd.s32 %v330, %v321
    %v332 = vmul.u32 %v287, %v278
    %v333 = vadd.s32 %v309, %v328
    %vm334 = vc.u32 %v309, %v328
    %v335 = vadd.s32 %v331, 1
    %v336 = vsel %vm334, %v335, %v331
    %v337 = vadd.s32 %v332, %v336
    %v338 = vadd.s32 %v337, 536870912
    %v339 = vshrl.u32 %v338, 30
    %v340 = vshll.u32 %v339, 30
    %v341 = vsub.s32 %v337, %v340
    %vm342 = vcmp.lt.s32.totalorder %v341, 0
    %v343 = vsub.s32 0, %v341
    %v344 = vsel %vm342, %v343, %v341
    %v345 = vclz %v344
    %v346 = vsub.s32 %v345, 2
    %vm347 = vcmp.gt.s32.totalorder 0, %v346
    %v348 = vsel %vm347, 0, %v346
    %v349 = vsub.s32 32, %v348
    %v350 = vshll.u32 %v341, %v348
    %v351 = vshrl.u32 %v333, %v349
    %v352 = vor.u32 %v350, %v351
    %v353 = vsub.s32 4294967266, %v348
    %v354 = vadd.s32 %v353, 127
    %v355 = vshll.u32 %v354, 23
    %v356 = vor.u32 4788187, %v355
    %v357 = vand.u32 2147483647, %v356
    %v359 = vcvt.s32.f32 %v352
    %v360 = vmul.f32 %v359, %v357
    %v361 = vxor.u32 %v360, 2147483648
    %v362 = vsel %vm241, %v361, %v360
    %v363 = vsub.s32 4, %v339
    %v364 = vsel %vm241, %v363, %v339
    %v365 = vsel %vm240, %v84, %v362
    %v366 = vsel %vm240, 0, %v364
    %v367 = vmul.f32 %v365, %v365
    %v368 = vmul.f32 %v367, -0.001358992
    %v369 = vadd.f32 %v368, 0.041655596
    %v370 = vmul.f32 %v367, %v369
    %v371 = vadd.f32 %v370, -0.4999988
    %v372 = vmul.f32 %v367, %v371
    %v373 = vadd.f32 1.0, %v372
    %v374 = vmul.f32 %v365, %v365
    %v375 = vmul.f32 %v374, -0.00019511016
    %v376 = vadd.f32 %v375, 0.008332121
    %v377 = vmul.f32 %v374, %v376
    %v378 = vadd.f32 %v377, -0.16666654
    %v379 = vmul.f32 %v374, %v378
    %v380 = vadd.f32 %v379, 1.0
    %v381 = vmul.f32 %v380, %v365
    %vm382 = vweird.f32 %v84
    %v383 = vadd.s32 %v366, 3
    %v384 = vand.u32 %v383, 3
    %vm385 = vcmp.lt.s32.totalorder %v384, 2
    %vm386 = vcmp.eq.s32.totalorder %v384, 0
    %v387 = vxor.u32 %v381, 2147483648
    %v388 = vsel %vm386, %v373, %v387
    %vm389 = vcmp.eq.s32.totalorder %v384, 2
    %v390 = vxor.u32 %v373, 2147483648
    %v391 = vsel %vm389, %v390, %v381
    %v392 = vsel %vm385, %v388, %v391
    %v393 = vsel %vm382, nan, %v392
    %v394 = vld [vmem:[#allocation2] sm:$0xff]
    %v395 = vld [vmem:[#allocation2 + $0x8] sm:$0xff]
    %v396 = vld [vmem:[#allocation2 + $0x10] sm:$0xff]
    %v397 = vld [vmem:[#allocation2 + $0x18] sm:$0xff]
    %v398 = vld [vmem:[#allocation2 + $0x20] sm:$0xff]
    %v399 = vld [vmem:[#allocation2 + $0x28] sm:$0xff]
    %v400 = vld [vmem:[#allocation2 + $0x30] sm:$0xff]
    %v401 = vld [vmem:[#allocation2 + $0x38] sm:$0xff]
    %v402 = vld [vmem:[#allocation2 + $0x40] sm:$0xff]
    %v403 = vld [vmem:[#allocation2 + $0x48] sm:$0xff]
    %v404 = vld [vmem:[#allocation2 + $0x50] sm:$0xff]
    %v405 = vld [vmem:[#allocation2 + $0x58] sm:$0xff]
    %v406 = vld [vmem:[#allocation2 + $0x60] sm:$0xff]
    %v407 = vld [vmem:[#allocation2 + $0x68] sm:$0xff]
    %v408 = vld [vmem:[#allocation2 + $0x70] sm:$0xff]
    %v409 = vld [vmem:[#allocation2 + $0x78] sm:$0xff]
    %v410 = vld [vmem:[#allocation5] sm:$0xff]
    %v411 = vld [vmem:[#allocation5 + $0x8] sm:$0xff]
    %v412 = vld [vmem:[#allocation5 + $0x10] sm:$0xff]
    %v413 = vld [vmem:[#allocation5 + $0x18] sm:$0xff]
    %v414 = vld [vmem:[#allocation5 + $0x20] sm:$0xff]
    %v415 = vld [vmem:[#allocation5 + $0x28] sm:$0xff]
    %v416 = vld [vmem:[#allocation5 + $0x30] sm:$0xff]
    %v417 = vld [vmem:[#allocation5 + $0x38] sm:$0xff]
    %v418 = vld [vmem:[#allocation5 + $0x40] sm:$0xff]
    %v419 = vld [vmem:[#allocation5 + $0x48] sm:$0xff]
    %v420 = vld [vmem:[#allocation5 + $0x50] sm:$0xff]
    %v421 = vld [vmem:[#allocation5 + $0x58] sm:$0xff]
    %v422 = vld [vmem:[#allocation5 + $0x60] sm:$0xff]
    %v423 = vld [vmem:[#allocation5 + $0x68] sm:$0xff]
    %v424 = vld [vmem:[#allocation5 + $0x70] sm:$0xff]
    %v425 = vld [vmem:[#allocation5 + $0x78] sm:$0xff]
    %426 = vmatpush.msra.mxu0 %v425
    %427 = vmatpush.msra.mxu0 %v424
    %428 = vmatpush.msra.mxu0 %v423
    %429 = vmatpush.msra.mxu0 %v422
    %430 = vmatpush.msra.mxu0 %v421
    %431 = vmatpush.msra.mxu0 %v420
    %432 = vmatpush.msra.mxu0 %v419
    %433 = vmatpush.msra.mxu0 %v418
    %434 = vmatpush.msra.mxu0 %v417
    %435 = vmatpush.msra.mxu0 %v416
    %436 = vmatpush.msra.mxu0 %v415
    %437 = vmatpush.msra.mxu0 %v414
    %438 = vmatpush.msra.mxu0 %v413
    %439 = vmatpush.msra.mxu0 %v412
    %440 = vmatpush.msra.mxu0 %v411
    %441 = vmatpush.msra.mxu0 %v410
    %442 = vmatmul.f32.gmra.mxu0 %v393
    %v443 = vpop.f32.mrf.mxu0
    %v444 = vadd.f32 0.0, %v443
    %445 = vdwg.mxu0
    %446 = vmatpush.msra.mxu0 %v409
    %447 = vmatpush.msra.mxu0 %v408
    %448 = vmatpush.msra.mxu0 %v407
    %449 = vmatpush.msra.mxu0 %v406
    %450 = vmatpush.msra.mxu0 %v405
    %451 = vmatpush.msra.mxu0 %v404
    %452 = vmatpush.msra.mxu0 %v403
    %453 = vmatpush.msra.mxu0 %v402
    %454 = vmatpush.msra.mxu0 %v401
    %455 = vmatpush.msra.mxu0 %v400
    %456 = vmatpush.msra.mxu0 %v399
    %457 = vmatpush.msra.mxu0 %v398
    %458 = vmatpush.msra.mxu0 %v397
    %459 = vmatpush.msra.mxu0 %v396
    %460 = vmatpush.msra.mxu0 %v395
    %461 = vmatpush.msra.mxu0 %v394
    %462 = vmatmul.f32.gmra.mxu0 %v238
    %v463 = vpop.f32.mrf.mxu0
    %v464 = vadd.f32 %v444, %v463
    %465 = vdwg.mxu0
    %v466 = vld [vmem:[%s4] sm:$0x1]
    %v468 = vperm.slane %v466, 0
    %v470 = vadd.f32 %v464, %v468
    %v471 = vmul.f32 %v470, 0.5
    %v472 = vtanh.pop %v471
    %v473 = vadd.f32 %v472, 1.0
    %v474 = vmul.f32 %v473, 0.5
    %v475 = vmul.f32 %v470, %v474
    %v476 = vld [vmem:[#allocation7] sm:$0xff]
    %v477 = vld [vmem:[#allocation7 + $0x8] sm:$0xff]
    %v478 = vld [vmem:[#allocation7 + $0x10] sm:$0xff]
    %v479 = vld [vmem:[#allocation7 + $0x18] sm:$0xff]
    %v480 = vld [vmem:[#allocation7 + $0x20] sm:$0xff]
    %v481 = vld [vmem:[#allocation7 + $0x28] sm:$0xff]
    %v482 = vld [vmem:[#allocation7 + $0x30] sm:$0xff]
    %v483 = vld [vmem:[#allocation7 + $0x38] sm:$0xff]
    %v484 = vld [vmem:[#allocation7 + $0x40] sm:$0xff]
    %v485 = vld [vmem:[#allocation7 + $0x48] sm:$0xff]
    %v486 = vld [vmem:[#allocation7 + $0x50] sm:$0xff]
    %v487 = vld [vmem:[#allocation7 + $0x58] sm:$0xff]
    %v488 = vld [vmem:[#allocation7 + $0x60] sm:$0xff]
    %v489 = vld [vmem:[#allocation7 + $0x68] sm:$0xff]
    %v490 = vld [vmem:[#allocation7 + $0x70] sm:$0xff]
    %v491 = vld [vmem:[#allocation7 + $0x78] sm:$0xff]
    %v492 = vld [vmem:[%s6] sm:$0x1]
    %v494 = vperm.slane %v492, 0
    %496 = vmatpush.msra.mxu0 %v491
    %497 = vmatpush.msra.mxu0 %v490
    %498 = vmatpush.msra.mxu0 %v489
    %499 = vmatpush.msra.mxu0 %v488
    %500 = vmatpush.msra.mxu0 %v487
    %501 = vmatpush.msra.mxu0 %v486
    %502 = vmatpush.msra.mxu0 %v485
    %503 = vmatpush.msra.mxu0 %v484
    %504 = vmatpush.msra.mxu0 %v483
    %505 = vmatpush.msra.mxu0 %v482
    %506 = vmatpush.msra.mxu0 %v481
    %507 = vmatpush.msra.mxu0 %v480
    %508 = vmatpush.msra.mxu0 %v479
    %509 = vmatpush.msra.mxu0 %v478
    %510 = vmatpush.msra.mxu0 %v477
    %511 = vmatpush.msra.mxu0 %v476
    %512 = vmatmul.f32.gmra.mxu0 %v475
    %v513 = vpop.f32.mrf.mxu0
    %v514 = vadd.f32 %v494, %v513
    %515 = vdwg.mxu0
    %516 = vst [vmem:[#allocation8] sm:$0xff] %v514
    // Predicated region
    $region42: #{tpu_custom_call.1} parent=1 // pred_check
      _
    $region43: #{tpu_custom_call.1} parent=1 // pred_check_branch
      %518 = sbr.rel (0) target = $region45
    $region44: #{tpu_custom_call.1} parent=1 // pred_region
      %520 = vsyncadd [#allocation4], 0
      %s522 = sshll.u32 [#allocation8], 4
      %s523 = int_to_ptr.vmem [resolvable:$true] %s522
      %s524 = sshll.u32 %s7, 4
      %s525 = int_to_ptr.hbm [resolvable:$true] %s524
      %527 = dma.vmem_to_hbm [thread:$0]  %s523, 128, %s525, [#allocation4]
    $region45: #{tpu_custom_call.1} parent=1 // pred_fallthru
      _
    // Predicated region
    $region46: #{tpu_custom_call.1} parent=1 // pred_check
      _
    $region47: #{tpu_custom_call.1} parent=1 // pred_check_branch
      %529 = sbr.rel (0) target = $region49
    $region48: #{tpu_custom_call.1} parent=1 // pred_region
      %531 = dma.done [#allocation4], 128
    $region49: #{tpu_custom_call.1} parent=1 // pred_fallthru
      _
    %532 = vsyncpa [#allocation3], 1
    %533 = vsyncpa [#allocation6], 1
    %534 = vsyncpa [#allocation4], 1

</llo_original>
